<compile_context>
chip_gen: v7x
topology: tpu7x:2x2x1
jax: 0.10.0
libtpu: 0.0.40
codegen_flags: <defaults>
</compile_context>

<pallas_src>
import jax
import jax.numpy as jnp
import numpy as np
from jax.experimental import pallas as pl
from jax.experimental.pallas import tpu as pltpu


# ------------------------------------------------------------------ helpers

def _round_up(v, m):
    return (v + m - 1) // m * m


def _cdiv(a, b):
    return -(-a // b)


def _pad_dim(d):
    # Lane-dense padding. 256-alignment for larger dims (v6e/v7x MXU is 2x256x256);
    # 128 for small dims where the extra padding waste would dominate.
    return _round_up(d, 256) if d >= 512 else _round_up(d, 128)


def _choose_tile_n(n, max_tile=512):
    """Balanced, 8-aligned row tiles: never pads the row count by more than a few rows."""
    n8 = _round_up(max(n, 1), 8)
    if n8 <= max_tile:
        return n8
    n_tiles = _cdiv(n8, max_tile)
    return _round_up(_cdiv(n8, n_tiles), 8)


def _resident_spec(shape):
    """Constant-index block: stays resident in VMEM across all grid steps.
    Buffered(1) drops the pointless second pipeline buffer (block is never re-fetched),
    halving resident weight VMEM. Returns (spec, buffer_count) for VMEM accounting."""
    index_map = lambda i: (0, 0)
    try:
        return pl.BlockSpec(shape, index_map, pipeline_mode=pl.Buffered(1)), 1
    except Exception:  # pipeline_mode not available in this jax version -> default 2 buffers
        return pl.BlockSpec(shape, index_map), 2


# ------------------------------------------------------------------ kernels

def _residual_mlp_kernel_linear_sc(x_ref, wa_ref, ba_ref, w2_ref, c2_ref, w3_ref, b3_ref,
                                   o_ref):
    """Shortcut is an nn.Linear, fused into the fc1 matmul: x @ [W1' | Ws]."""
    hid_p = w2_ref.shape[0]

    # Cast per tile on the VPU (hides under the first matmul); no-op if already bf16.
    x = x_ref[...].astype(wa_ref.dtype)

    # Fused (fc1 w/ folded BN1 | shortcut) matmul; biases already folded into ba.
    ha = jnp.dot(x, wa_ref[...], preferred_element_type=jnp.float32) + ba_ref[...]
    h = jnp.maximum(ha[:, :hid_p], 0.0)          # fc1 -> BN1 -> ReLU (f32, tile-aligned slice)
    residual = ha[:, hid_p:]                     # shortcut branch (no ReLU)

    # fc2 -> BN2 (folded) -> ReLU    (dropout == identity in eval)
    h = jnp.dot(h.astype(w2_ref.dtype), w2_ref[...],
                preferred_element_type=jnp.float32) + c2_ref[...]
    h = jnp.maximum(h, 0.0)

    # fc3 + residual
    out = jnp.dot(h.astype(w3_ref.dtype), w3_ref[...],
                  preferred_element_type=jnp.float32) + b3_ref[...]
    o_ref[...] = (out + residual).astype(o_ref.dtype)


def _residual_mlp_kernel_identity_sc(x_ref, w1_ref, c1_ref, w2_ref, c2_ref, w3_ref, b3_ref,
                                     o_ref):
    """Shortcut is nn.Identity (in_dim == out_dim): residual = x, added on the VPU
    (no extra matmul, no identity weight resident in VMEM)."""
    x = x_ref[...]
    xc = x.astype(w1_ref.dtype)

    h = jnp.maximum(jnp.dot(xc, w1_ref[...], preferred_element_type=jnp.float32)
                    + c1_ref[...], 0.0)
    h = jnp.maximum(jnp.dot(h.astype(w2_ref.dtype), w2_ref[...],
                            preferred_element_type=jnp.float32) + c2_ref[...], 0.0)
    out = jnp.dot(h.astype(w3_ref.dtype), w3_ref[...],
                  preferred_element_type=jnp.float32) + b3_ref[...]

    # in_p == out_p here; padded columns of x are zero, so the add is inert on padding.
    o_ref[...] = (out + x.astype(jnp.float32)).astype(o_ref.dtype)


# ------------------------------------------------------------------ wrapper

def prepare_params(params, compute_dtype=jnp.bfloat16):
    """Fold eval-mode BN into the Linears, fuse fc1 with a Linear shortcut, zero-pad to
    lane-dense shapes, cast matmul operands to the MXU compute dtype."""
    in_dim, hidden = params["w1"].shape
    out_dim = params["w3"].shape[1]
    identity_sc = "ws" not in params          # nn.Identity shortcut (in_dim == out_dim)

    in_p = _pad_dim(in_dim)
    hid_p = _pad_dim(hidden)
    out_p = _pad_dim(out_dim)
    if identity_sc:                            # residual add needs matching lane layout
        in_p = out_p = max(in_p, out_p)

    # Fold eval-mode BatchNorm (running stats) into the preceding Linear.
    w1f = params["w1"] * params["s1"]
    c1 = params["b1"] * params["s1"] + params["t1"]
    w2f = params["w2"] * params["s2"]
    c2 = params["b2"] * params["s2"] + params["t2"]

    def pad2(a, r, c):
        return jnp.pad(a, ((0, r - a.shape[0]), (0, c - a.shape[1])))

    if identity_sc:
        wa = pad2(w1f, in_p, hid_p)
        ba = pad2(c1, 1, hid_p)
    else:
        # Fuse fc1' and the shortcut Linear along the output dim: x @ [W1' | Ws].
        wa = jnp.concatenate([pad2(w1f, in_p, hid_p), pad2(params["ws"], in_p, out_p)], axis=1)
        ba = jnp.concatenate([pad2(c1, 1, hid_p), pad2(params["bs"], 1, out_p)], axis=1)

    # TODO(synk): optional fp8 weight dtype for v7x (bf16 activations x fp8 weights) when the
    #             accuracy budget allows; keep bf16 here for generation-agnostic correctness.
    return dict(
        identity_sc=identity_sc,
        wa=wa.astype(compute_dtype),
        ba=ba.astype(jnp.float32),
        w2=pad2(w2f, hid_p, hid_p).astype(compute_dtype),
        c2=pad2(c2, 1, hid_p).astype(jnp.float32),
        w3=pad2(params["w3"], hid_p, out_p).astype(compute_dtype),
        b3=pad2(params["b3"], 1, out_p).astype(jnp.float32),
        dims=(in_dim, hidden, out_dim, in_p, hid_p, out_p),
    )


def residual_mlp_forward(x, prepped, *, max_tile_n=512, out_dtype=None):
    """x: [N, in_dim]. prepped: output of prepare_params. Returns [N, out_dim]."""
    in_dim, hidden, out_dim, in_p, hid_p, out_p = prepped["dims"]
    n = x.shape[0]
    out_dtype = jnp.dtype(x.dtype) if out_dtype is None else jnp.dtype(out_dtype)

    weights = (prepped["wa"], prepped["ba"], prepped["w2"], prepped["c2"],
               prepped["w3"], prepped["b3"])
    compute_dtype = prepped["wa"].dtype

    weight_specs, weight_vmem = [], 0
    for w in weights:
        spec, nbuf = _resident_spec(w.shape)
        weight_specs.append(spec)
        weight_vmem += nbuf * int(np.prod(w.shape)) * jnp.dtype(w.dtype).itemsize

    try:
        phys_vmem = int(pltpu.get_tpu_info().vmem_capacity_bytes)
    except Exception:
        phys_vmem = 64 << 20            # conservative fallback: v7x per-TensorCore VMEM

    def tile_vmem(tn, x_item, out_item):
        return (2 * tn * in_p * x_item            # double-buffered x tile
                + 2 * tn * out_p * out_item       # double-buffered output tile
                + 4 * tn * (hid_p + out_p) * 4)   # generous f32 intermediate slack

    # Balanced row tiles; shrink if resident weights + tiles overrun ~80% of physical VMEM.
    tile_n = _choose_tile_n(n, max_tile_n)
    x_item0 = max(jnp.dtype(x.dtype).itemsize, jnp.dtype(compute_dtype).itemsize)
    while (tile_n > 8 and
           weight_vmem + tile_vmem(tile_n, x_item0, out_dtype.itemsize) > int(0.8 * phys_vmem)):
        tile_n = _round_up(max(tile_n // 2, 8), 8)

    # TODO(synk): if the single-buffered weights alone exceed ~1/3 of physical VMEM (very large
    #             hidden dims), add a second "arbitrary" grid axis over the feature dim with a
    #             scratch accumulator instead of keeping all weights resident.

    n_p = _round_up(n, tile_n)
    need_pad = (n_p != n) or (in_p != in_dim)
    if need_pad:
        # Zero padding is inert for eval-mode BN/Linear on the feature axis; padded *rows* are
        # garbage after the bias add and are sliced away below.
        x_in = jnp.pad(x, ((0, n_p - n), (0, in_p - in_dim))).astype(compute_dtype)
    else:
        # No extra HBM round-trip: pass x as-is; the kernel casts each tile on the VPU.
        x_in = x

    vmem_limit = min(
        phys_vmem,
        max(32 << 20,
            int(1.2 * (weight_vmem + tile_vmem(tile_n, jnp.dtype(x_in.dtype).itemsize,
                                               out_dtype.itemsize))) + (2 << 20)))

    kernel = (_residual_mlp_kernel_identity_sc if prepped["identity_sc"]
              else _residual_mlp_kernel_linear_sc)

    fn = pl.pallas_call(
        kernel,
        out_shape=jax.ShapeDtypeStruct((n_p, out_p), out_dtype),
        grid=(n_p // tile_n,),
        in_specs=[pl.BlockSpec((tile_n, in_p), lambda i: (i, 0))] + weight_specs,
        out_specs=pl.BlockSpec((tile_n, out_p), lambda i: (i, 0)),
        compiler_params=pltpu.CompilerParams(
            dimension_semantics=("parallel",),      # row tiles shard across TCs on v7x
            vmem_limit_bytes=vmem_limit),
    )
    out = fn(x_in, *weights)
    if n_p != n or out_p != out_dim:
        out = out[:n, :out_dim]
    return out


# ------------------------------------------------------------------ synthetic params / reference

def init_params(key, in_dim, hidden_dim, out_dim, eps=1e-5):
    """Deterministic synthetic parameters (PyTorch shapes, laid out for x @ W)."""
    ks = jax.random.split(key, 16)
    u = lambda k, shape, lim: jax.random.uniform(k, shape, jnp.float32, -lim, lim)

    # nn.Linear weights: PyTorch stores [out, in]; we store transposed [in, out].
    w1 = u(ks[0], (in_dim, hidden_dim), 1.0 / np.sqrt(in_dim))
    b1 = u(ks[1], (1, hidden_dim), 1.0 / np.sqrt(in_dim))
    w2 = u(ks[2], (hidden_dim, hidden_dim), 1.0 / np.sqrt(hidden_dim))
    b2 = u(ks[3], (1, hidden_dim), 1.0 / np.sqrt(hidden_dim))
    w3 = u(ks[4], (hidden_dim, out_dim), 1.0 / np.sqrt(hidden_dim))
    b3 = u(ks[5], (1, out_dim), 1.0 / np.sqrt(hidden_dim))

    # BatchNorm1d parameters + running stats (eval mode) reduced to scale/shift.
    def bn_fold(kg, kb, km, kv, dim):
        gamma = 1.0 + 0.1 * jax.random.normal(kg, (1, dim), jnp.float32)
        beta = 0.1 * jax.random.normal(kb, (1, dim), jnp.float32)
        running_mean = 0.1 * jax.random.normal(km, (1, dim), jnp.float32)
        running_var = 1.0 + 0.1 * jax.random.uniform(kv, (1, dim), jnp.float32)
        scale = gamma / jnp.sqrt(running_var + eps)
        shift = beta - running_mean * scale
        return scale, shift

    s1, t1 = bn_fold(ks[6], ks[7], ks[8], ks[9], hidden_dim)
    s2, t2 = bn_fold(ks[10], ks[11], ks[12], ks[13], hidden_dim)

    params = dict(w1=w1, b1=b1, s1=s1, t1=t1,
                  w2=w2, b2=b2, s2=s2, t2=t2,
                  w3=w3, b3=b3)
    if in_dim != out_dim:                 # nn.Linear shortcut; nn.Identity otherwise (no ws/bs)
        params["ws"] = u(ks[14], (in_dim, out_dim), 1.0 / np.sqrt(in_dim))
        params["bs"] = u(ks[15], (1, out_dim), 1.0 / np.sqrt(in_dim))
    return params


def _reference_forward(x, p):
    """Pure-f32 reference reproducing module.eval() semantics."""
    res = (x @ p["ws"] + p["bs"]) if "ws" in p else x
    h = jnp.maximum((x @ p["w1"] + p["b1"]) * p["s1"] + p["t1"], 0.0)
    h = jnp.maximum((h @ p["w2"] + p["b2"]) * p["s2"] + p["t2"], 0.0)
    return h @ p["w3"] + p["b3"] + res


if __name__ == "__main__":
    key = jax.random.PRNGKey(0)
    k1, k2, kx1, kx2 = jax.random.split(key, 4)

    # Case 1: in_dim != out_dim -> Linear shortcut fused into the fc1 matmul.
    N1, IN1, HID1, OUT1 = 16, 16, 32, 8
    x1 = jax.random.normal(kx1, (N1, IN1), jnp.float32)
    p1 = init_params(k1, IN1, HID1, OUT1)
    out1 = jax.block_until_ready(residual_mlp_forward(x1, prepare_params(p1)))
    # bf16 MXU operands -> tolerance loosened accordingly.
    np.testing.assert_allclose(np.asarray(out1), np.asarray(_reference_forward(x1, p1)),
                               rtol=2e-2, atol=5e-2)

    # Case 2: in_dim == out_dim -> nn.Identity shortcut (in-kernel VPU add, no extra matmul);
    # N=12 exercises the balanced row-padding path.
    N2, IN2, HID2, OUT2 = 12, 32, 64, 32
    x2 = jax.random.normal(kx2, (N2, IN2), jnp.float32)
    p2 = init_params(k2, IN2, HID2, OUT2)
    out2 = jax.block_until_ready(residual_mlp_forward(x2, prepare_params(p2)))
    np.testing.assert_allclose(np.asarray(out2), np.asarray(_reference_forward(x2, p2)),
                               rtol=2e-2, atol=5e-2)

    print("KERNEL_OK")
</pallas_src>

<mosaic_0001>
module attributes {stable_mosaic.version = 11 : i64} {
  func.func @_residual_mlp_kernel_linear_sc(%arg0: i32, %arg1: memref<16x128xbf16, #tpu.memory_space<vmem>>, %arg2: memref<128x256xbf16, #tpu.memory_space<vmem>>, %arg3: memref<1x256xf32, #tpu.memory_space<vmem>>, %arg4: memref<128x128xbf16, #tpu.memory_space<vmem>>, %arg5: memref<1x128xf32, #tpu.memory_space<vmem>>, %arg6: memref<128x128xbf16, #tpu.memory_space<vmem>>, %arg7: memref<1x128xf32, #tpu.memory_space<vmem>>, %arg8: memref<16x128xf32, #tpu.memory_space<vmem>>) attributes {dimension_semantics = [#tpu.dimension_semantics<parallel>], iteration_bounds = array<i64: 1>, scalar_prefetch = 0 : i64, scratch_operands = 0 : i64, tpu.core_type = #tpu.core_type<tc>, window_params = [{transform_indices = @transform_0, window_bounds = array<i64: 16, 128>}, {pipeline_mode = #tpu.pipeline_mode<synchronous>, transform_indices = @transform_1, window_bounds = array<i64: 128, 256>}, {pipeline_mode = #tpu.pipeline_mode<synchronous>, transform_indices = @transform_2, window_bounds = array<i64: 1, 256>}, {pipeline_mode = #tpu.pipeline_mode<synchronous>, transform_indices = @transform_3, window_bounds = array<i64: 128, 128>}, {pipeline_mode = #tpu.pipeline_mode<synchronous>, transform_indices = @transform_4, window_bounds = array<i64: 1, 128>}, {pipeline_mode = #tpu.pipeline_mode<synchronous>, transform_indices = @transform_5, window_bounds = array<i64: 128, 128>}, {pipeline_mode = #tpu.pipeline_mode<synchronous>, transform_indices = @transform_6, window_bounds = array<i64: 1, 128>}, {transform_indices = @transform_7, window_bounds = array<i64: 16, 128>}]} {
    %c0 = arith.constant 0 : index
    %c0_0 = arith.constant 0 : index
    %0 = vector.load %arg1[%c0, %c0_0] : memref<16x128xbf16, #tpu.memory_space<vmem>>, vector<16x128xbf16>
    %c0_1 = arith.constant 0 : index
    %c0_2 = arith.constant 0 : index
    %1 = vector.load %arg2[%c0_1, %c0_2] : memref<128x256xbf16, #tpu.memory_space<vmem>>, vector<128x256xbf16>
    %cst = arith.constant dense<0.000000e+00> : vector<16x256xf32>
    %2 = tpu.matmul %0, %1, %cst {dimension_numbers = #tpu.dot_dimension_numbers<[1], [0], [0], [1], [0, 0, 1, 1], [], []>} : vector<16x128xbf16>, vector<128x256xbf16>, vector<16x256xf32> -> vector<16x256xf32>
    %c0_3 = arith.constant 0 : index
    %c0_4 = arith.constant 0 : index
    %3 = vector.load %arg3[%c0_3, %c0_4] : memref<1x256xf32, #tpu.memory_space<vmem>>, vector<1x256xf32>
    %4 = vector.broadcast %3 : vector<1x256xf32> to vector<16x256xf32>
    %5 = arith.addf %2, %4 : vector<16x256xf32>
    %6 = vector.extract_strided_slice %5 {offsets = [0, 0], sizes = [16, 128], strides = [1, 1]} : vector<16x256xf32> to vector<16x128xf32>
    %cst_5 = arith.constant 0.000000e+00 : f32
    %7 = vector.broadcast %cst_5 : f32 to vector<16x128xf32>
    %8 = arith.maximumf %6, %7 : vector<16x128xf32>
    %9 = vector.extract_strided_slice %5 {offsets = [0, 128], sizes = [16, 128], strides = [1, 1]} : vector<16x256xf32> to vector<16x128xf32>
    %10 = arith.truncf %8 : vector<16x128xf32> to vector<16x128xbf16>
    %c0_6 = arith.constant 0 : index
    %c0_7 = arith.constant 0 : index
    %11 = vector.load %arg4[%c0_6, %c0_7] : memref<128x128xbf16, #tpu.memory_space<vmem>>, vector<128x128xbf16>
    %cst_8 = arith.constant dense<0.000000e+00> : vector<16x128xf32>
    %12 = tpu.matmul %10, %11, %cst_8 {dimension_numbers = #tpu.dot_dimension_numbers<[1], [0], [0], [1], [0, 0, 1, 1], [], []>} : vector<16x128xbf16>, vector<128x128xbf16>, vector<16x128xf32> -> vector<16x128xf32>
    %c0_9 = arith.constant 0 : index
    %c0_10 = arith.constant 0 : index
    %13 = vector.load %arg5[%c0_9, %c0_10] : memref<1x128xf32, #tpu.memory_space<vmem>>, vector<1x128xf32>
    %14 = vector.broadcast %13 : vector<1x128xf32> to vector<16x128xf32>
    %15 = arith.addf %12, %14 : vector<16x128xf32>
    %cst_11 = arith.constant 0.000000e+00 : f32
    %16 = vector.broadcast %cst_11 : f32 to vector<16x128xf32>
    %17 = arith.maximumf %15, %16 : vector<16x128xf32>
    %18 = arith.truncf %17 : vector<16x128xf32> to vector<16x128xbf16>
    %c0_12 = arith.constant 0 : index
    %c0_13 = arith.constant 0 : index
    %19 = vector.load %arg6[%c0_12, %c0_13] : memref<128x128xbf16, #tpu.memory_space<vmem>>, vector<128x128xbf16>
    %cst_14 = arith.constant dense<0.000000e+00> : vector<16x128xf32>
    %20 = tpu.matmul %18, %19, %cst_14 {dimension_numbers = #tpu.dot_dimension_numbers<[1], [0], [0], [1], [0, 0, 1, 1], [], []>} : vector<16x128xbf16>, vector<128x128xbf16>, vector<16x128xf32> -> vector<16x128xf32>
    %c0_15 = arith.constant 0 : index
    %c0_16 = arith.constant 0 : index
    %21 = vector.load %arg7[%c0_15, %c0_16] : memref<1x128xf32, #tpu.memory_space<vmem>>, vector<1x128xf32>
    %22 = vector.broadcast %21 : vector<1x128xf32> to vector<16x128xf32>
    %23 = arith.addf %20, %22 : vector<16x128xf32>
    %24 = arith.addf %23, %9 : vector<16x128xf32>
    %c0_17 = arith.constant 0 : index
    %c0_18 = arith.constant 0 : index
    %25 = vector.load %arg8[%c0_17, %c0_18] : memref<16x128xf32, #tpu.memory_space<vmem>>, vector<16x128xf32>
    tpu.vector_store %arg8[%c0_17, %c0_18], %24 {strides = array<i32>} : memref<16x128xf32, #tpu.memory_space<vmem>>, vector<16x128xf32>,
    return
  }
  func.func @transform_0(%arg0: i32) -> (i32, i32) {
    %c0_i32 = arith.constant 0 : i32
    %c0_i32_0 = arith.constant 0 : i32
    return %arg0, %c0_i32 : i32, i32
  }
  func.func @transform_1(%arg0: i32) -> (i32, i32) {
    %c0_i32 = arith.constant 0 : i32
    %c0_i32_0 = arith.constant 0 : i32
    %c0_i32_1 = arith.constant 0 : i32
    return %c0_i32, %c0_i32_0 : i32, i32
  }
  func.func @transform_2(%arg0: i32) -> (i32, i32) {
    %c0_i32 = arith.constant 0 : i32
    %c0_i32_0 = arith.constant 0 : i32
    %c0_i32_1 = arith.constant 0 : i32
    return %c0_i32, %c0_i32_0 : i32, i32
  }
  func.func @transform_3(%arg0: i32) -> (i32, i32) {
    %c0_i32 = arith.constant 0 : i32
    %c0_i32_0 = arith.constant 0 : i32
    %c0_i32_1 = arith.constant 0 : i32
    return %c0_i32, %c0_i32_0 : i32, i32
  }
  func.func @transform_4(%arg0: i32) -> (i32, i32) {
    %c0_i32 = arith.constant 0 : i32
    %c0_i32_0 = arith.constant 0 : i32
    %c0_i32_1 = arith.constant 0 : i32
    return %c0_i32, %c0_i32_0 : i32, i32
  }
  func.func @transform_5(%arg0: i32) -> (i32, i32) {
    %c0_i32 = arith.constant 0 : i32
    %c0_i32_0 = arith.constant 0 : i32
    %c0_i32_1 = arith.constant 0 : i32
    return %c0_i32, %c0_i32_0 : i32, i32
  }
  func.func @transform_6(%arg0: i32) -> (i32, i32) {
    %c0_i32 = arith.constant 0 : i32
    %c0_i32_0 = arith.constant 0 : i32
    %c0_i32_1 = arith.constant 0 : i32
    return %c0_i32, %c0_i32_0 : i32, i32
  }
  func.func @transform_7(%arg0: i32) -> (i32, i32) {
    %c0_i32 = arith.constant 0 : i32
    %c0_i32_0 = arith.constant 0 : i32
    return %arg0, %c0_i32 : i32, i32
  }
}

</mosaic_0001>

<llo_original>
// kernel: tpu_custom_call.1
$region0: #{tpu_custom_call.1}
  #allocation0 [shape = 'u32[]', space=smem, size = 0x4, offset = 0x4, fixed_abs, tag = 'smem constant byte address 0x4 - core index']
  #allocation1 [shape = 'u32[144,128]{1,0:T(1,128)}', space=vmem, size = 0x12000, scoped, tag = 'internal scratch']
  %s0 = inlined_call_operand.hbm [shape: bf16[16,128], index: 0, kind: input, shape index: {}]
  %s1 = inlined_call_operand.hbm [shape: bf16[128,256], index: 1, kind: input, shape index: {}]
  %s2 = inlined_call_operand.vmem [shape: f32[1,256], index: 2, kind: input, shape index: {}]
  %s3 = inlined_call_operand.hbm [shape: bf16[128,128], index: 3, kind: input, shape index: {}]
  %s4 = inlined_call_operand.vmem [shape: f32[1,128], index: 4, kind: input, shape index: {}]
  %s5 = inlined_call_operand.hbm [shape: bf16[128,128], index: 5, kind: input, shape index: {}]
  %s6 = inlined_call_operand.vmem [shape: f32[1,128], index: 6, kind: input, shape index: {}]
  %s7 = inlined_call_operand.hbm [shape: f32[16,128], index: 7, kind: output, shape index: {}]
  %s8 = sld [smem:[#allocation0]]
  $region54: #{tpu_custom_call.1} parent=0
    _
  %s10 = ssub.s32 1, %s8
  %s11 = scalar_select 0, %s10, %s8
  $region1: #{tpu_custom_call.1} parent=0
    #allocation2 [shape = 'u8[4096]{0}', space=vmem, size = 0x1000, scoped, tag = 'input window, operand 0, single buffered']
    #allocation3 [shape = 's32[1]{0}', space=sflag, size = 0x4, scoped, tag = 'scoped memory for tpu_custom_call.1']
    #allocation4 [shape = 's32[1]{0}', space=sflag, size = 0x4, scoped, tag = 'scoped memory for tpu_custom_call.1']
    #allocation5 [shape = 'u8[65536]{0}', space=vmem, size = 0x10000, scoped, tag = 'input window, operand 1, single buffered']
    #allocation6 [shape = 's32[1]{0}', space=sflag, size = 0x4, scoped, tag = 'scoped memory for tpu_custom_call.1']
    #allocation7 [shape = 'u8[32768]{0}', space=vmem, size = 0x8000, scoped, tag = 'input window, operand 3, single buffered']
    #allocation8 [shape = 'u8[32768]{0}', space=vmem, size = 0x8000, scoped, tag = 'input window, operand 5, single buffered']
    #allocation9 [shape = 's32[1]{0}', space=sflag, size = 0x4, scoped, tag = 'scoped memory for tpu_custom_call.1']
    #allocation10 [shape = 'u8[8192]{0}', space=vmem, size = 0x2000, scoped, tag = 'output window, operand 0, single buffered']
    %12 = vsyncpa [#allocation3], 0
    %13 = vsyncpa [#allocation6], 0
    %14 = vsyncpa [#allocation9], 0
    %15 = vsyncpa [#allocation4], 0
    // Predicated region
    $region2: #{tpu_custom_call.1} parent=1 // pred_check
      _
    $region3: #{tpu_custom_call.1} parent=1 // pred_check_branch
      %17 = sbr.rel (0) target = $region5
    $region4: #{tpu_custom_call.1} parent=1 // pred_region
      %s19 = ssub.s32 128, 128
      %20 = vsyncadd [#allocation3], %s19
      %s21 = sshll.u32 [#allocation2], 4
      %s22 = int_to_ptr.vmem [resolvable:$true] %s21
      %27 = dma.hbm_to_vmem [thread:$0]  %s0, 128, %s22, [#allocation3], 64, 64, 4
    $region5: #{tpu_custom_call.1} parent=1 // pred_fallthru
      _
    // Predicated region
    $region6: #{tpu_custom_call.1} parent=1 // pred_check
      _
    $region7: #{tpu_custom_call.1} parent=1 // pred_check_branch
      %29 = sbr.rel (0) target = $region9
    $region8: #{tpu_custom_call.1} parent=1 // pred_region
      %s31 = ssub.s32 2048, 2048
      %32 = vsyncadd [#allocation6], %s31
      %s33 = sshll.u32 [#allocation5], 4
      %s34 = int_to_ptr.vmem [resolvable:$true] %s33
      %39 = dma.hbm_to_vmem [thread:$0]  %s1, 2048, %s34, [#allocation6], 128, 128, 8
    $region9: #{tpu_custom_call.1} parent=1 // pred_fallthru
      _
    // Predicated region
    $region10: #{tpu_custom_call.1} parent=1 // pred_check
      _
    $region11: #{tpu_custom_call.1} parent=1 // pred_check_branch
      %41 = sbr.rel (0) target = $region13
    $region12: #{tpu_custom_call.1} parent=1 // pred_region
      _
    $region13: #{tpu_custom_call.1} parent=1 // pred_fallthru
      _
    // Predicated region
    $region14: #{tpu_custom_call.1} parent=1 // pred_check
      _
    $region15: #{tpu_custom_call.1} parent=1 // pred_check_branch
      %43 = sbr.rel (0) target = $region17
    $region16: #{tpu_custom_call.1} parent=1 // pred_region
      %s45 = ssub.s32 1024, 1024
      %46 = vsyncadd [#allocation6], %s45
      %s47 = sshll.u32 [#allocation7], 4
      %s48 = int_to_ptr.vmem [resolvable:$true] %s47
      %53 = dma.hbm_to_vmem [thread:$0]  %s3, 1024, %s48, [#allocation6], 64, 64, 4
    $region17: #{tpu_custom_call.1} parent=1 // pred_fallthru
      _
    // Predicated region
    $region18: #{tpu_custom_call.1} parent=1 // pred_check
      _
    $region19: #{tpu_custom_call.1} parent=1 // pred_check_branch
      %55 = sbr.rel (0) target = $region21
    $region20: #{tpu_custom_call.1} parent=1 // pred_region
      _
    $region21: #{tpu_custom_call.1} parent=1 // pred_fallthru
      _
    // Predicated region
    $region22: #{tpu_custom_call.1} parent=1 // pred_check
      _
    $region23: #{tpu_custom_call.1} parent=1 // pred_check_branch
      %57 = sbr.rel (0) target = $region25
    $region24: #{tpu_custom_call.1} parent=1 // pred_region
      %s59 = ssub.s32 1024, 1024
      %60 = vsyncadd [#allocation9], %s59
      %s61 = sshll.u32 [#allocation8], 4
      %s62 = int_to_ptr.vmem [resolvable:$true] %s61
      %67 = dma.hbm_to_vmem [thread:$0]  %s5, 1024, %s62, [#allocation9], 64, 64, 4
    $region25: #{tpu_custom_call.1} parent=1 // pred_fallthru
      _
    // Predicated region
    $region26: #{tpu_custom_call.1} parent=1 // pred_check
      _
    $region27: #{tpu_custom_call.1} parent=1 // pred_check_branch
      %69 = sbr.rel (0) target = $region29
    $region28: #{tpu_custom_call.1} parent=1 // pred_region
      _
    $region29: #{tpu_custom_call.1} parent=1 // pred_fallthru
      _
    // Predicated region
    $region30: #{tpu_custom_call.1} parent=1 // pred_check
      _
    $region31: #{tpu_custom_call.1} parent=1 // pred_check_branch
      %71 = sbr.rel (0) target = $region33
    $region32: #{tpu_custom_call.1} parent=1 // pred_region
      %72 = dma.done [#allocation3], 128
    $region33: #{tpu_custom_call.1} parent=1 // pred_fallthru
      _
    // Predicated region
    $region34: #{tpu_custom_call.1} parent=1 // pred_check
      _
    $region35: #{tpu_custom_call.1} parent=1 // pred_check_branch
      %74 = sbr.rel (0) target = $region37
    $region36: #{tpu_custom_call.1} parent=1 // pred_region
      %75 = dma.done [#allocation6], 2048
    $region37: #{tpu_custom_call.1} parent=1 // pred_fallthru
      _
    // Predicated region
    $region38: #{tpu_custom_call.1} parent=1 // pred_check
      _
    $region39: #{tpu_custom_call.1} parent=1 // pred_check_branch
      %77 = sbr.rel (0) target = $region41
    $region40: #{tpu_custom_call.1} parent=1 // pred_region
      %78 = dma.done [#allocation6], 1024
    $region41: #{tpu_custom_call.1} parent=1 // pred_fallthru
      _
    // Predicated region
    $region42: #{tpu_custom_call.1} parent=1 // pred_check
      _
    $region43: #{tpu_custom_call.1} parent=1 // pred_check_branch
      %80 = sbr.rel (0) target = $region45
    $region44: #{tpu_custom_call.1} parent=1 // pred_region
      %81 = dma.done [#allocation9], 1024
    $region45: #{tpu_custom_call.1} parent=1 // pred_fallthru
      _
    %v83 = vld [vmem:[#allocation2] sm:$0xf]
    %v84 = vld [vmem:[#allocation2 + $0x4] sm:$0xf]
    %v85 = vld [vmem:[#allocation5] sm:$0xff]
    %v86 = vld [vmem:[#allocation5 + $0x8] sm:$0xff]
    %v87 = vld [vmem:[#allocation5 + $0x10] sm:$0xff]
    %v88 = vld [vmem:[#allocation5 + $0x18] sm:$0xff]
    %v89 = vld [vmem:[#allocation5 + $0x20] sm:$0xff]
    %v90 = vld [vmem:[#allocation5 + $0x28] sm:$0xff]
    %v91 = vld [vmem:[#allocation5 + $0x30] sm:$0xff]
    %v92 = vld [vmem:[#allocation5 + $0x38] sm:$0xff]
    %v93 = vld [vmem:[#allocation5 + $0x40] sm:$0xff]
    %v94 = vld [vmem:[#allocation5 + $0x48] sm:$0xff]
    %v95 = vld [vmem:[#allocation5 + $0x50] sm:$0xff]
    %v96 = vld [vmem:[#allocation5 + $0x58] sm:$0xff]
    %v97 = vld [vmem:[#allocation5 + $0x60] sm:$0xff]
    %v98 = vld [vmem:[#allocation5 + $0x68] sm:$0xff]
    %v99 = vld [vmem:[#allocation5 + $0x70] sm:$0xff]
    %v100 = vld [vmem:[#allocation5 + $0x78] sm:$0xff]
    %v101 = vld [vmem:[%s2] sm:$0x3]
    %v103 = vlaneseq
    %v104 = vshrl.u32 %v103, 7
    %v105 = vsub.s32 0, %v104
    %v106 = vrot.slane %v101, %v105
    %v107 = vlaneseq
    %v108 = vshrl.u32 %v107, 7
    %v109 = vsub.s32 1, %v108
    %v110 = vrot.slane %v101, %v109
    %v115 = vunpack.c.l.b16 %v83
    %v116 = vunpack.c.l.b16 %v84
    %v117 = vpack.c.b16 %v116, %v115
    %v135 = vunpack.c.l.b16 %v85
    %v136 = vunpack.c.h.b16 %v85
    %v137 = vunpack.c.l.b16 %v86
    %v138 = vunpack.c.h.b16 %v86
    %v139 = vunpack.c.l.b16 %v87
    %v140 = vunpack.c.h.b16 %v87
    %v141 = vunpack.c.l.b16 %v88
    %v142 = vunpack.c.h.b16 %v88
    %v143 = vunpack.c.l.b16 %v89
    %v144 = vunpack.c.h.b16 %v89
    %v145 = vunpack.c.l.b16 %v90
    %v146 = vunpack.c.h.b16 %v90
    %v147 = vunpack.c.l.b16 %v91
    %v148 = vunpack.c.h.b16 %v91
    %v149 = vunpack.c.l.b16 %v92
    %v150 = vunpack.c.h.b16 %v92
    %v151 = vunpack.c.l.b16 %v93
    %v152 = vunpack.c.h.b16 %v93
    %v153 = vunpack.c.l.b16 %v94
    %v154 = vunpack.c.h.b16 %v94
    %v155 = vunpack.c.l.b16 %v95
    %v156 = vunpack.c.h.b16 %v95
    %v157 = vunpack.c.l.b16 %v96
    %v158 = vunpack.c.h.b16 %v96
    %v159 = vunpack.c.l.b16 %v97
    %v160 = vunpack.c.h.b16 %v97
    %v161 = vunpack.c.l.b16 %v98
    %v162 = vunpack.c.h.b16 %v98
    %v163 = vunpack.c.l.b16 %v99
    %v164 = vunpack.c.h.b16 %v99
    %v165 = vunpack.c.l.b16 %v100
    %v166 = vunpack.c.h.b16 %v100
    %v167 = vpack.c.b16 %v137, %v135
    %v168 = vpack.c.b16 %v138, %v136
    %v169 = vpack.c.b16 %v141, %v139
    %v170 = vpack.c.b16 %v142, %v140
    %v171 = vpack.c.b16 %v145, %v143
    %v172 = vpack.c.b16 %v146, %v144
    %v173 = vpack.c.b16 %v149, %v147
    %v174 = vpack.c.b16 %v150, %v148
    %v175 = vpack.c.b16 %v153, %v151
    %v176 = vpack.c.b16 %v154, %v152
    %v177 = vpack.c.b16 %v157, %v155
    %v178 = vpack.c.b16 %v158, %v156
    %v179 = vpack.c.b16 %v161, %v159
    %v180 = vpack.c.b16 %v162, %v160
    %v181 = vpack.c.b16 %v165, %v163
    %v182 = vpack.c.b16 %v166, %v164
    %199 = vmatprep.subr.bf16.mxu0 %v168
    %200 = vmatpush1.bf16.msra.mxu0 %v167
    %201 = vmatprep.subr.bf16.mxu0 %v170
    %202 = vmatpush1.bf16.msra.mxu0 %v169
    %203 = vmatprep.subr.bf16.mxu0 %v172
    %204 = vmatpush1.bf16.msra.mxu0 %v171
    %205 = vmatprep.subr.bf16.mxu0 %v174
    %206 = vmatpush1.bf16.msra.mxu0 %v173
    %207 = vmatprep.subr.bf16.mxu0 %v176
    %208 = vmatpush1.bf16.msra.mxu0 %v175
    %209 = vmatprep.subr.bf16.mxu0 %v178
    %210 = vmatpush1.bf16.msra.mxu0 %v177
    %211 = vmatprep.subr.bf16.mxu0 %v180
    %212 = vmatpush1.bf16.msra.mxu0 %v179
    %213 = vmatprep.subr.bf16.mxu0 %v182
    %214 = vmatpush1.bf16.msra.mxu0 %v181
    %215 = vmatprep.subr.bf16.mxu0 0
    %216 = vmatpush1.bf16.msra.mxu0 0
    %217 = vmatprep.subr.bf16.mxu0 0
    %218 = vmatpush1.bf16.msra.mxu0 0
    %219 = vmatprep.subr.bf16.mxu0 0
    %220 = vmatpush1.bf16.msra.mxu0 0
    %221 = vmatprep.subr.bf16.mxu0 0
    %222 = vmatpush1.bf16.msra.mxu0 0
    %223 = vmatprep.subr.bf16.mxu0 0
    %224 = vmatpush1.bf16.msra.mxu0 0
    %225 = vmatprep.subr.bf16.mxu0 0
    %226 = vmatpush1.bf16.msra.mxu0 0
    %227 = vmatprep.subr.bf16.mxu0 0
    %228 = vmatpush1.bf16.msra.mxu0 0
    %229 = vmatprep.subr.bf16.mxu0 0
    %230 = vmatpush1.bf16.msra.mxu0 0
    %231 = vmatprep.mubr.bf16.mxu0 0
    %232 = vmatmul.mubr.bf16.gmra.mrb[0].mxu0 %v117
    %v233 = vpop.f32.mrb[0].mxu0
    %v234 = vadd.f32 %v106, %v233
    %v235 = vpop.f32.mrb[0].mxu0
    %v236 = vadd.f32 %v110, %v235
    %v237 = vpop.f32.mrb[0].mxu0
    %v238 = vadd.f32 %v106, %v237
    %v239 = vpop.f32.mrb[0].mxu0
    %v240 = vadd.f32 %v110, %v239
    %241 = vdwg.mxu0
    %v242 = vmax.f32 %v234, 0.0
    %v243 = vmax.f32 %v238, 0.0
    %v244 = vpack.c.bf16 %v243, %v242
    %v245 = vld [vmem:[#allocation7] sm:$0xf]
    %v246 = vld [vmem:[#allocation7 + $0x4] sm:$0xf]
    %v247 = vld [vmem:[#allocation7 + $0x8] sm:$0xf]
    %v248 = vld [vmem:[#allocation7 + $0xc] sm:$0xf]
    %v249 = vld [vmem:[#allocation7 + $0x10] sm:$0xf]
    %v250 = vld [vmem:[#allocation7 + $0x14] sm:$0xf]
    %v251 = vld [vmem:[#allocation7 + $0x18] sm:$0xf]
    %v252 = vld [vmem:[#allocation7 + $0x1c] sm:$0xf]
    %v253 = vld [vmem:[#allocation7 + $0x20] sm:$0xf]
    %v254 = vld [vmem:[#allocation7 + $0x24] sm:$0xf]
    %v255 = vld [vmem:[#allocation7 + $0x28] sm:$0xf]
    %v256 = vld [vmem:[#allocation7 + $0x2c] sm:$0xf]
    %v257 = vld [vmem:[#allocation7 + $0x30] sm:$0xf]
    %v258 = vld [vmem:[#allocation7 + $0x34] sm:$0xf]
    %v259 = vld [vmem:[#allocation7 + $0x38] sm:$0xf]
    %v260 = vld [vmem:[#allocation7 + $0x3c] sm:$0xf]
    %v261 = vld [vmem:[%s4] sm:$0x1]
    %v263 = vlaneseq
    %v264 = vshrl.u32 %v263, 7
    %v265 = vsub.s32 0, %v264
    %v266 = vrot.slane %v261, %v265
    %v284 = vunpack.c.l.b16 %v245
    %v285 = vunpack.c.l.b16 %v246
    %v286 = vunpack.c.l.b16 %v247
    %v287 = vunpack.c.l.b16 %v248
    %v288 = vunpack.c.l.b16 %v249
    %v289 = vunpack.c.l.b16 %v250
    %v290 = vunpack.c.l.b16 %v251
    %v291 = vunpack.c.l.b16 %v252
    %v292 = vunpack.c.l.b16 %v253
    %v293 = vunpack.c.l.b16 %v254
    %v294 = vunpack.c.l.b16 %v255
    %v295 = vunpack.c.l.b16 %v256
    %v296 = vunpack.c.l.b16 %v257
    %v297 = vunpack.c.l.b16 %v258
    %v298 = vunpack.c.l.b16 %v259
    %v299 = vunpack.c.l.b16 %v260
    %v300 = vpack.c.b16 %v285, %v284
    %v301 = vpack.c.b16 %v287, %v286
    %v302 = vpack.c.b16 %v289, %v288
    %v303 = vpack.c.b16 %v291, %v290
    %v304 = vpack.c.b16 %v293, %v292
    %v305 = vpack.c.b16 %v295, %v294
    %v306 = vpack.c.b16 %v297, %v296
    %v307 = vpack.c.b16 %v299, %v298
    %316 = vmatprep.subr.bf16.mxu0 0
    %317 = vmatpush1.bf16.msra.mxu0 %v300
    %318 = vmatprep.subr.bf16.mxu0 0
    %319 = vmatpush1.bf16.msra.mxu0 %v301
    %320 = vmatprep.subr.bf16.mxu0 0
    %321 = vmatpush1.bf16.msra.mxu0 %v302
    %322 = vmatprep.subr.bf16.mxu0 0
    %323 = vmatpush1.bf16.msra.mxu0 %v303
    %324 = vmatprep.subr.bf16.mxu0 0
    %325 = vmatpush1.bf16.msra.mxu0 %v304
    %326 = vmatprep.subr.bf16.mxu0 0
    %327 = vmatpush1.bf16.msra.mxu0 %v305
    %328 = vmatprep.subr.bf16.mxu0 0
    %329 = vmatpush1.bf16.msra.mxu0 %v306
    %330 = vmatprep.subr.bf16.mxu0 0
    %331 = vmatpush1.bf16.msra.mxu0 %v307
    %332 = vmatprep.subr.bf16.mxu0 0
    %333 = vmatpush1.bf16.msra.mxu0 0
    %334 = vmatprep.subr.bf16.mxu0 0
    %335 = vmatpush1.bf16.msra.mxu0 0
    %336 = vmatprep.subr.bf16.mxu0 0
    %337 = vmatpush1.bf16.msra.mxu0 0
    %338 = vmatprep.subr.bf16.mxu0 0
    %339 = vmatpush1.bf16.msra.mxu0 0
    %340 = vmatprep.subr.bf16.mxu0 0
    %341 = vmatpush1.bf16.msra.mxu0 0
    %342 = vmatprep.subr.bf16.mxu0 0
    %343 = vmatpush1.bf16.msra.mxu0 0
    %344 = vmatprep.subr.bf16.mxu0 0
    %345 = vmatpush1.bf16.msra.mxu0 0
    %346 = vmatprep.subr.bf16.mxu0 0
    %347 = vmatpush1.bf16.msra.mxu0 0
    %348 = vmatprep.mubr.bf16.mxu0 0
    %349 = vmatmul.mubr.bf16.gmra.mrb[0].mxu0 %v244
    %v350 = vpop.f32.mrb[0].mxu0
    %v351 = vadd.f32 %v266, %v350
    %v352 = vpop.f32.mrb[0].mxu0
    %v353 = vpop.f32.mrb[0].mxu0
    %v354 = vadd.f32 %v266, %v353
    %v355 = vpop.f32.mrb[0].mxu0
    %356 = vdwg.mxu0
    %v357 = vmax.f32 %v351, 0.0
    %v358 = vmax.f32 %v354, 0.0
    %v359 = vpack.c.bf16 %v358, %v357
    %v360 = vld [vmem:[#allocation8] sm:$0xf]
    %v361 = vld [vmem:[#allocation8 + $0x4] sm:$0xf]
    %v362 = vld [vmem:[#allocation8 + $0x8] sm:$0xf]
    %v363 = vld [vmem:[#allocation8 + $0xc] sm:$0xf]
    %v364 = vld [vmem:[#allocation8 + $0x10] sm:$0xf]
    %v365 = vld [vmem:[#allocation8 + $0x14] sm:$0xf]
    %v366 = vld [vmem:[#allocation8 + $0x18] sm:$0xf]
    %v367 = vld [vmem:[#allocation8 + $0x1c] sm:$0xf]
    %v368 = vld [vmem:[#allocation8 + $0x20] sm:$0xf]
    %v369 = vld [vmem:[#allocation8 + $0x24] sm:$0xf]
    %v370 = vld [vmem:[#allocation8 + $0x28] sm:$0xf]
    %v371 = vld [vmem:[#allocation8 + $0x2c] sm:$0xf]
    %v372 = vld [vmem:[#allocation8 + $0x30] sm:$0xf]
    %v373 = vld [vmem:[#allocation8 + $0x34] sm:$0xf]
    %v374 = vld [vmem:[#allocation8 + $0x38] sm:$0xf]
    %v375 = vld [vmem:[#allocation8 + $0x3c] sm:$0xf]
    %v376 = vld [vmem:[%s6] sm:$0x1]
    %v378 = vlaneseq
    %v379 = vshrl.u32 %v378, 7
    %v380 = vsub.s32 0, %v379
    %v381 = vrot.slane %v376, %v380
    %v399 = vunpack.c.l.b16 %v360
    %v400 = vunpack.c.l.b16 %v361
    %v401 = vunpack.c.l.b16 %v362
    %v402 = vunpack.c.l.b16 %v363
    %v403 = vunpack.c.l.b16 %v364
    %v404 = vunpack.c.l.b16 %v365
    %v405 = vunpack.c.l.b16 %v366
    %v406 = vunpack.c.l.b16 %v367
    %v407 = vunpack.c.l.b16 %v368
    %v408 = vunpack.c.l.b16 %v369
    %v409 = vunpack.c.l.b16 %v370
    %v410 = vunpack.c.l.b16 %v371
    %v411 = vunpack.c.l.b16 %v372
    %v412 = vunpack.c.l.b16 %v373
    %v413 = vunpack.c.l.b16 %v374
    %v414 = vunpack.c.l.b16 %v375
    %v415 = vpack.c.b16 %v400, %v399
    %v416 = vpack.c.b16 %v402, %v401
    %v417 = vpack.c.b16 %v404, %v403
    %v418 = vpack.c.b16 %v406, %v405
    %v419 = vpack.c.b16 %v408, %v407
    %v420 = vpack.c.b16 %v410, %v409
    %v421 = vpack.c.b16 %v412, %v411
    %v422 = vpack.c.b16 %v414, %v413
    %431 = vmatprep.subr.bf16.mxu0 0
    %432 = vmatpush1.bf16.msra.mxu0 %v415
    %433 = vmatprep.subr.bf16.mxu0 0
    %434 = vmatpush1.bf16.msra.mxu0 %v416
    %435 = vmatprep.subr.bf16.mxu0 0
    %436 = vmatpush1.bf16.msra.mxu0 %v417
    %437 = vmatprep.subr.bf16.mxu0 0
    %438 = vmatpush1.bf16.msra.mxu0 %v418
    %439 = vmatprep.subr.bf16.mxu0 0
    %440 = vmatpush1.bf16.msra.mxu0 %v419
    %441 = vmatprep.subr.bf16.mxu0 0
    %442 = vmatpush1.bf16.msra.mxu0 %v420
    %443 = vmatprep.subr.bf16.mxu0 0
    %444 = vmatpush1.bf16.msra.mxu0 %v421
    %445 = vmatprep.subr.bf16.mxu0 0
    %446 = vmatpush1.bf16.msra.mxu0 %v422
    %447 = vmatprep.subr.bf16.mxu0 0
    %448 = vmatpush1.bf16.msra.mxu0 0
    %449 = vmatprep.subr.bf16.mxu0 0
    %450 = vmatpush1.bf16.msra.mxu0 0
    %451 = vmatprep.subr.bf16.mxu0 0
    %452 = vmatpush1.bf16.msra.mxu0 0
    %453 = vmatprep.subr.bf16.mxu0 0
    %454 = vmatpush1.bf16.msra.mxu0 0
    %455 = vmatprep.subr.bf16.mxu0 0
    %456 = vmatpush1.bf16.msra.mxu0 0
    %457 = vmatprep.subr.bf16.mxu0 0
    %458 = vmatpush1.bf16.msra.mxu0 0
    %459 = vmatprep.subr.bf16.mxu0 0
    %460 = vmatpush1.bf16.msra.mxu0 0
    %461 = vmatprep.subr.bf16.mxu0 0
    %462 = vmatpush1.bf16.msra.mxu0 0
    %463 = vmatprep.mubr.bf16.mxu0 0
    %464 = vmatmul.mubr.bf16.gmra.mrb[0].mxu0 %v359
    %v465 = vpop.f32.mrb[0].mxu0
    %v466 = vadd.f32 %v381, %v465
    %v467 = vpop.f32.mrb[0].mxu0
    %v468 = vpop.f32.mrb[0].mxu0
    %v469 = vadd.f32 %v381, %v468
    %v470 = vpop.f32.mrb[0].mxu0
    %471 = vdwg.mxu0
    %v472 = vadd.f32 %v466, %v236
    %v473 = vadd.f32 %v469, %v240
    %474 = vst [vmem:[#allocation10] sm:$0xff] %v472
    %475 = vst [vmem:[#allocation10 + $0x8] sm:$0xff] %v473
    // Predicated region
    $region46: #{tpu_custom_call.1} parent=1 // pred_check
      _
    $region47: #{tpu_custom_call.1} parent=1 // pred_check_branch
      %477 = sbr.rel (0) target = $region49
    $region48: #{tpu_custom_call.1} parent=1 // pred_region
      %s479 = ssub.s32 256, 256
      %480 = vsyncadd [#allocation4], %s479
      %s481 = sshll.u32 [#allocation10], 4
      %s482 = int_to_ptr.vmem [resolvable:$true] %s481
      %487 = dma.vmem_to_hbm [thread:$0]  %s482, 256, %s7, [#allocation4], 128, 128, 8
    $region49: #{tpu_custom_call.1} parent=1 // pred_fallthru
      _
    // Predicated region
    $region50: #{tpu_custom_call.1} parent=1 // pred_check
      _
    $region51: #{tpu_custom_call.1} parent=1 // pred_check_branch
      %489 = sbr.rel (0) target = $region53
    $region52: #{tpu_custom_call.1} parent=1 // pred_region
      %490 = dma.done [#allocation4], 256
    $region53: #{tpu_custom_call.1} parent=1 // pred_fallthru
      _
    %491 = vsyncpa [#allocation3], 1
    %492 = vsyncpa [#allocation6], 1
    %493 = vsyncpa [#allocation9], 1
    %494 = vsyncpa [#allocation4], 1

</llo_original>
